<compile_context>
chip_gen: v7x
topology: tpu7x:2x2x1
jax: 0.10.0
libtpu: 0.0.40
codegen_flags: <defaults>
</compile_context>

<pallas_src>
import functools

import jax
import jax.numpy as jnp
from jax.experimental import pallas as pl
from jax.experimental.pallas import tpu as pltpu

DROPOUT_P = 0.5


def _fused_gcn2_kernel(adj1_ref, x_ref, w1t_ref, mask_ref, adj2_ref, w2t_ref,
                       out_ref, h_ref):
    """Fused 2-layer GCN on one row-tile of the final output.

    adj1_ref : (N, N)        full learnable adjacency, layer 1
    x_ref    : (N, d0)       full input features
    w1t_ref  : (d0, d1)      W1 pre-transposed
    mask_ref : (N, d1)       dropout keep-mask, pre-scaled by 1/(1-p) (ones in eval)
    adj2_ref : (tile_n, N)   row tile of learnable adjacency, layer 2
    w2t_ref  : (d1, d2)      W2 pre-transposed
    out_ref  : (tile_n, d2)
    h_ref    : (N, d1)       VMEM scratch holding the full layer-1 output;
                             computed once at grid step 0 and reused.
    """
    # Layer 1 (full): computed once, kept resident in VMEM scratch.
    @pl.when(pl.program_id(0) == 0)
    def _():
        ax = jnp.dot(adj1_ref[...], x_ref[...],
                     preferred_element_type=jnp.float32)
        h = jnp.dot(ax, w1t_ref[...], preferred_element_type=jnp.float32)
        h = jnp.maximum(h, 0.0) * mask_ref[...]          # ReLU + dropout (1 mul)
        h_ref[...] = h

    # Layer 2 (this row tile): (tile_n, N) @ (N, d1) @ (d1, d2)
    ah = jnp.dot(adj2_ref[...], h_ref[...], preferred_element_type=jnp.float32)
    out_ref[...] = jnp.dot(ah, w2t_ref[...],
                           preferred_element_type=jnp.float32
                           ).astype(out_ref.dtype)


def _pick_tile_n(n, tile_n):
    if tile_n is not None:
        return tile_n
    if n <= 512:
        return n
    # Largest multiple-of-8 divisor of n that is <= 512 (big tiles amortize
    # the ~0.35 us per-grid-step overhead).
    for cand in range(512, 7, -8):
        if n % cand == 0:
            return cand
    return n


def fused_gcn2(adj1, adj2, x, w1t, w2t, mask, *, tile_n=None):
    """out = (adj2 @ (relu((adj1 @ x) @ w1t) * mask)) @ w2t, one pallas_call."""
    n, d0 = x.shape
    d1 = w1t.shape[1]
    d2 = w2t.shape[1]
    assert adj1.shape == (n, n) and adj2.shape == (n, n)
    assert w1t.shape == (d0, d1) and w2t.shape == (d1, d2)
    assert mask.shape == (n, d1)

    tile_n = _pick_tile_n(n, tile_n)
    assert tile_n == n or (tile_n % 8 == 0 and n % tile_n == 0), \
        "tile_n must be a multiple of 8 dividing N (or equal to N)"

    # VMEM budget (f32, conservatively double-buffered inputs) + scratch.
    est = 4 * (2 * (n * n + tile_n * n + n * d0 + d0 * d1 + n * d1 + d1 * d2
                    + tile_n * d2) + n * d1)
    vmem_limit = int(min(max(2 * est, 32 * 1024 * 1024), 64 * 1024 * 1024))
    assert est <= 56 * 1024 * 1024, \
        "graph too large for the fused single-kernel path (see TODO above)"

    return pl.pallas_call(
        _fused_gcn2_kernel,
        out_shape=jax.ShapeDtypeStruct((n, d2), jnp.float32),
        grid_spec=pltpu.PrefetchScalarGridSpec(
            num_scalar_prefetch=0,
            grid=(n // tile_n,),
            in_specs=[
                pl.BlockSpec((n, n), lambda i: (0, 0)),        # adj1 (resident)
                pl.BlockSpec((n, d0), lambda i: (0, 0)),       # x    (resident)
                pl.BlockSpec((d0, d1), lambda i: (0, 0)),      # W1^T (resident)
                pl.BlockSpec((n, d1), lambda i: (0, 0)),       # dropout mask
                pl.BlockSpec((tile_n, n), lambda i: (i, 0)),   # adj2 row tile
                pl.BlockSpec((d1, d2), lambda i: (0, 0)),      # W2^T (resident)
            ],
            out_specs=pl.BlockSpec((tile_n, d2), lambda i: (i, 0)),
            scratch_shapes=[pltpu.VMEM((n, d1), jnp.float32)],  # h, lives on-chip
        ),
        # "arbitrary": the h scratch carried across steps must stay on one core.
        compiler_params=pltpu.CompilerParams(
            dimension_semantics=("arbitrary",),
            vmem_limit_bytes=vmem_limit),
    )(adj1, x, w1t, mask, adj2, w2t)


def make_dropout_mask(rng_key, shape, p=DROPOUT_P):
    """Keep-mask pre-scaled by 1/(1-p) (inverted dropout), f32."""
    keep = jax.random.bernoulli(rng_key, 1.0 - p, shape)
    return keep.astype(jnp.float32) * (1.0 / (1.0 - p))


def net_gcn_admm_forward(x, adj, params, val_test=False, rng_key=None,
                         tile_n=None):
    """Mirrors net_gcn_admm.forward(x, adj, val_test).

    Note: exactly like the PyTorch module, the `adj` argument is unused in the
    forward pass -- the learnable adj_layer1 / adj_layer2 parameters are used.
    """
    del adj
    adj_layer1, adj_layer2, w1, w2 = params
    n = x.shape[0]
    d1 = w1.shape[0]
    if val_test or rng_key is None:
        mask = jnp.ones((n, d1), dtype=jnp.float32)
    else:
        mask = make_dropout_mask(rng_key, (n, d1))
    # Pre-transpose PyTorch-layout weights (out,in) -> (in,out) for the MXU.
    return fused_gcn2(adj_layer1, adj_layer2, x, w1.T, w2.T, mask,
                      tile_n=tile_n)


def generate_adj_mask(input_adj):
    # Plain-JAX glue, same semantics as the torch helper (not on the hot path).
    return jnp.where(input_adj != 0,
                     jnp.ones_like(input_adj),
                     jnp.zeros_like(input_adj))


if __name__ == "__main__":
    key = jax.random.PRNGKey(0)
    k_x, k_adj, k_w1, k_w2, k_drop = jax.random.split(key, 5)

    # Small, module-consistent shapes: N nodes, embedding_dim = [32, 16, 8].
    N = 128
    embedding_dim = [32, 16, 8]

    x = jax.random.normal(k_x, (N, embedding_dim[0]), dtype=jnp.float32)

    # Deterministic synthetic (normalized) adjacency with self-loops.
    a = (jax.random.uniform(k_adj, (N, N)) < 0.05).astype(jnp.float32)
    adj = jnp.maximum(a, a.T) + jnp.eye(N, dtype=jnp.float32)
    adj = adj / jnp.sum(adj, axis=1, keepdims=True)

    # Parameters (as in __init__): adj_layer1/2 start as copies of adj;
    # Linear weights (out_features, in_features), bias=False.
    adj_layer1 = jnp.array(adj)
    adj_layer2 = jnp.array(adj)
    w1 = (jax.random.uniform(k_w1, (embedding_dim[1], embedding_dim[0]),
                             dtype=jnp.float32) - 0.5) * (2.0 / jnp.sqrt(embedding_dim[0]))
    w2 = (jax.random.uniform(k_w2, (embedding_dim[2], embedding_dim[1]),
                             dtype=jnp.float32) - 0.5) * (2.0 / jnp.sqrt(embedding_dim[1]))
    params = (adj_layer1, adj_layer2, w1, w2)

    # --- Eval path (val_test=True, no dropout) vs pure-JAX reference. -------
    # tile_n=64 deliberately exercises the multi-step grid + persistent-h path.
    out_eval = net_gcn_admm_forward(x, adj, params, val_test=True, tile_n=64)
    jax.block_until_ready(out_eval)
    h_ref = jnp.maximum((adj_layer1 @ x) @ w1.T, 0.0)
    out_ref = (adj_layer2 @ h_ref) @ w2.T
    assert out_eval.shape == (N, embedding_dim[-1])
    assert jnp.allclose(out_eval, out_ref, atol=1e-4, rtol=1e-4), \
        float(jnp.max(jnp.abs(out_eval - out_ref)))

    # --- Training path (dropout on layer 1) vs reference with same mask. ----
    out_train = net_gcn_admm_forward(x, adj, params, val_test=False,
                                     rng_key=k_drop, tile_n=64)
    jax.block_until_ready(out_train)
    mask_ref = make_dropout_mask(k_drop, (N, embedding_dim[1]))
    h_ref_tr = jnp.maximum((adj_layer1 @ x) @ w1.T, 0.0) * mask_ref
    out_ref_tr = (adj_layer2 @ h_ref_tr) @ w2.T
    assert out_train.shape == (N, embedding_dim[-1])
    assert jnp.allclose(out_train, out_ref_tr, atol=1e-4, rtol=1e-4), \
        float(jnp.max(jnp.abs(out_train - out_ref_tr)))

    print("KERNEL_OK")
</pallas_src>

<mosaic_0001>
module attributes {stable_mosaic.version = 11 : i64} {
  func.func @_fused_gcn2_kernel(%arg0: i32, %arg1: memref<128x128xf32, #tpu.memory_space<vmem>>, %arg2: memref<128x32xf32, #tpu.memory_space<vmem>>, %arg3: memref<32x16xf32, #tpu.memory_space<vmem>>, %arg4: memref<128x16xf32, #tpu.memory_space<vmem>>, %arg5: memref<64x128xf32, #tpu.memory_space<vmem>>, %arg6: memref<16x8xf32, #tpu.memory_space<vmem>>, %arg7: memref<64x8xf32, #tpu.memory_space<vmem>>, %arg8: memref<128x16xf32, #tpu.memory_space<vmem>>) attributes {dimension_semantics = [#tpu.dimension_semantics<arbitrary>], iteration_bounds = array<i64: 2>, scalar_prefetch = 0 : i64, scratch_operands = 1 : i64, tpu.core_type = #tpu.core_type<tc>, window_params = [{pipeline_mode = #tpu.pipeline_mode<synchronous>, transform_indices = @transform_0, window_bounds = array<i64: 128, 128>}, {pipeline_mode = #tpu.pipeline_mode<synchronous>, transform_indices = @transform_1, window_bounds = array<i64: 128, 32>}, {pipeline_mode = #tpu.pipeline_mode<synchronous>, transform_indices = @transform_2, window_bounds = array<i64: 32, 16>}, {pipeline_mode = #tpu.pipeline_mode<synchronous>, transform_indices = @transform_3, window_bounds = array<i64: 128, 16>}, {transform_indices = @transform_4, window_bounds = array<i64: 64, 128>}, {pipeline_mode = #tpu.pipeline_mode<synchronous>, transform_indices = @transform_5, window_bounds = array<i64: 16, 8>}, {transform_indices = @transform_6, window_bounds = array<i64: 64, 8>}]} {
    %c0_i32 = arith.constant 0 : i32
    %0 = arith.cmpi eq, %arg0, %c0_i32 : i32
    %1 = arith.extui %0 : i1 to i32
    %c0_i32_0 = arith.constant 0 : i32
    %2 = arith.cmpi ne, %1, %c0_i32_0 : i32
    scf.if %2 {
      %c0_9 = arith.constant 0 : index
      %c0_10 = arith.constant 0 : index
      %9 = vector.load %arg1[%c0_9, %c0_10] : memref<128x128xf32, #tpu.memory_space<vmem>>, vector<128x128xf32>
      %c0_11 = arith.constant 0 : index
      %c0_12 = arith.constant 0 : index
      %10 = vector.load %arg2[%c0_11, %c0_12] : memref<128x32xf32, #tpu.memory_space<vmem>>, vector<128x32xf32>
      %cst_13 = arith.constant dense<0.000000e+00> : vector<128x32xf32>
      %11 = tpu.matmul %9, %10, %cst_13 {dimension_numbers = #tpu.dot_dimension_numbers<[1], [0], [0], [1], [0, 0, 1, 1], [], []>} : vector<128x128xf32>, vector<128x32xf32>, vector<128x32xf32> -> vector<128x32xf32>
      %c0_14 = arith.constant 0 : index
      %c0_15 = arith.constant 0 : index
      %12 = vector.load %arg3[%c0_14, %c0_15] : memref<32x16xf32, #tpu.memory_space<vmem>>, vector<32x16xf32>
      %cst_16 = arith.constant dense<0.000000e+00> : vector<128x16xf32>
      %13 = tpu.matmul %11, %12, %cst_16 {dimension_numbers = #tpu.dot_dimension_numbers<[1], [0], [0], [1], [0, 0, 1, 1], [], []>} : vector<128x32xf32>, vector<32x16xf32>, vector<128x16xf32> -> vector<128x16xf32>
      %cst_17 = arith.constant 0.000000e+00 : f32
      %14 = vector.broadcast %cst_17 : f32 to vector<128x16xf32>
      %15 = arith.maximumf %13, %14 : vector<128x16xf32>
      %c0_18 = arith.constant 0 : index
      %c0_19 = arith.constant 0 : index
      %16 = vector.load %arg4[%c0_18, %c0_19] : memref<128x16xf32, #tpu.memory_space<vmem>>, vector<128x16xf32>
      %17 = arith.mulf %15, %16 : vector<128x16xf32>
      %c0_20 = arith.constant 0 : index
      %c0_21 = arith.constant 0 : index
      %18 = vector.load %arg8[%c0_20, %c0_21] : memref<128x16xf32, #tpu.memory_space<vmem>>, vector<128x16xf32>
      tpu.vector_store %arg8[%c0_20, %c0_21], %17 {strides = array<i32>} : memref<128x16xf32, #tpu.memory_space<vmem>>, vector<128x16xf32>,
    } else {
    }
    %c0 = arith.constant 0 : index
    %c0_1 = arith.constant 0 : index
    %3 = vector.load %arg5[%c0, %c0_1] : memref<64x128xf32, #tpu.memory_space<vmem>>, vector<64x128xf32>
    %c0_2 = arith.constant 0 : index
    %c0_3 = arith.constant 0 : index
    %4 = vector.load %arg8[%c0_2, %c0_3] : memref<128x16xf32, #tpu.memory_space<vmem>>, vector<128x16xf32>
    %cst = arith.constant dense<0.000000e+00> : vector<64x16xf32>
    %5 = tpu.matmul %3, %4, %cst {dimension_numbers = #tpu.dot_dimension_numbers<[1], [0], [0], [1], [0, 0, 1, 1], [], []>} : vector<64x128xf32>, vector<128x16xf32>, vector<64x16xf32> -> vector<64x16xf32>
    %c0_4 = arith.constant 0 : index
    %c0_5 = arith.constant 0 : index
    %6 = vector.load %arg6[%c0_4, %c0_5] : memref<16x8xf32, #tpu.memory_space<vmem>>, vector<16x8xf32>
    %cst_6 = arith.constant dense<0.000000e+00> : vector<64x8xf32>
    %7 = tpu.matmul %5, %6, %cst_6 {dimension_numbers = #tpu.dot_dimension_numbers<[1], [0], [0], [1], [0, 0, 1, 1], [], []>} : vector<64x16xf32>, vector<16x8xf32>, vector<64x8xf32> -> vector<64x8xf32>
    %c0_7 = arith.constant 0 : index
    %c0_8 = arith.constant 0 : index
    %8 = vector.load %arg7[%c0_7, %c0_8] : memref<64x8xf32, #tpu.memory_space<vmem>>, vector<64x8xf32>
    tpu.vector_store %arg7[%c0_7, %c0_8], %7 {strides = array<i32>} : memref<64x8xf32, #tpu.memory_space<vmem>>, vector<64x8xf32>,
    return
  }
  func.func @transform_0(%arg0: i32) -> (i32, i32) {
    %c0_i32 = arith.constant 0 : i32
    %c0_i32_0 = arith.constant 0 : i32
    %c0_i32_1 = arith.constant 0 : i32
    return %c0_i32, %c0_i32_0 : i32, i32
  }
  func.func @transform_1(%arg0: i32) -> (i32, i32) {
    %c0_i32 = arith.constant 0 : i32
    %c0_i32_0 = arith.constant 0 : i32
    %c0_i32_1 = arith.constant 0 : i32
    return %c0_i32, %c0_i32_0 : i32, i32
  }
  func.func @transform_2(%arg0: i32) -> (i32, i32) {
    %c0_i32 = arith.constant 0 : i32
    %c0_i32_0 = arith.constant 0 : i32
    %c0_i32_1 = arith.constant 0 : i32
    return %c0_i32, %c0_i32_0 : i32, i32
  }
  func.func @transform_3(%arg0: i32) -> (i32, i32) {
    %c0_i32 = arith.constant 0 : i32
    %c0_i32_0 = arith.constant 0 : i32
    %c0_i32_1 = arith.constant 0 : i32
    return %c0_i32, %c0_i32_0 : i32, i32
  }
  func.func @transform_4(%arg0: i32) -> (i32, i32) {
    %c0_i32 = arith.constant 0 : i32
    %c0_i32_0 = arith.constant 0 : i32
    return %arg0, %c0_i32 : i32, i32
  }
  func.func @transform_5(%arg0: i32) -> (i32, i32) {
    %c0_i32 = arith.constant 0 : i32
    %c0_i32_0 = arith.constant 0 : i32
    %c0_i32_1 = arith.constant 0 : i32
    return %c0_i32, %c0_i32_0 : i32, i32
  }
  func.func @transform_6(%arg0: i32) -> (i32, i32) {
    %c0_i32 = arith.constant 0 : i32
    %c0_i32_0 = arith.constant 0 : i32
    return %arg0, %c0_i32 : i32, i32
  }
}

</mosaic_0001>

<llo_original>
// kernel: tpu_custom_call.1
$region0: #{tpu_custom_call.1}
  #allocation0 [shape = 'u32[]', space=smem, size = 0x4, offset = 0x4, fixed_abs, tag = 'smem constant byte address 0x4 - core index']
  #allocation1 [shape = 'u32[144,128]{1,0:T(1,128)}', space=vmem, size = 0x12000, scoped, tag = 'internal scratch']
  #allocation2 [shape = 'f32[128,16]{1,0:T(8,128)}', space=vmem, size = 0x10000, scoped, tag = 'scratch operand']
  %s0 = inlined_call_operand.vmem [shape: f32[128,128], index: 0, kind: input, shape index: {}]
  %s1 = inlined_call_operand.vmem [shape: f32[128,32], index: 1, kind: input, shape index: {}]
  %s2 = inlined_call_operand.vmem [shape: f32[32,16], index: 2, kind: input, shape index: {}]
  %s3 = inlined_call_operand.vmem [shape: f32[128,16], index: 3, kind: input, shape index: {}]
  %s4 = inlined_call_operand.vmem [shape: f32[128,128], index: 4, kind: input, shape index: {}]
  %s5 = inlined_call_operand.vmem [shape: f32[16,8], index: 5, kind: input, shape index: {}]
  %s6 = inlined_call_operand.vmem [shape: f32[128,8], index: 6, kind: output, shape index: {}]
  %s7 = sld [smem:[#allocation0]]
  $region61: #{tpu_custom_call.1} parent=0
    _
  %s9 = ssub.s32 1, %s7
  %s10 = scalar_select 0, %s9, %s7
  loop: start=0, step=1, limit=4
  $region2: #{tpu_custom_call.1} parent=0 // loop_pre_header
    _
  $region3: #{tpu_custom_call.1} parent=0 // loop_header
    %s12 = sphi 0, %s16
    %p13 = scmp.ge.s32.totalorder %s12, 4
    %s20 = sphi 0, %s20
    %s22 = sphi 0, %s20
    %s23 = sphi 0, %s22
    %s37 = sphi 0, %s23
    %s41 = sphi 0, %s41
    %s43 = sphi 0, %s41
    %s44 = sphi 0, %s43
    %s58 = sphi 0, %s44
    %s62 = sphi 0, %s62
    %s64 = sphi 0, %s62
    %s65 = sphi 0, %s64
    %s79 = sphi 0, %s65
    %s83 = sphi 0, %s83
    %s85 = sphi 0, %s83
    %s86 = sphi 0, %s85
    %s100 = sphi 0, %s86
    %s106 = sphi 0, %s108
    %s109 = sphi 0, %s106
    %s110 = sphi 0, %s109
    %s126 = sphi 0, %s110
    %s130 = sphi 0, %s130
    %s132 = sphi 0, %s130
    %s133 = sphi 0, %s132
    %s147 = sphi 0, %s133
    %s153 = sphi 0, %s155
    %s156 = sphi 0, %s153
    %s157 = sphi 0, %s156
    %s173 = sphi 0, %s157
  $region4: #{tpu_custom_call.1} parent=0 // loop_header_branch
    %15 = sbr.rel (%p13) target = $region8
  $region5: #{tpu_custom_call.1} parent=0 // loop_body
    %s17 = ssub.s32 %s12, 1
    %s18 = ssub.s32 %s12, 2
    %s19 = sadd.s32 %s12, 1
    %s21 = sadd.s32 %s20, 1
    %p24 = scmp.eq.s32.totalorder %s12, 1
    %p25 = scmp.ne.s32.totalorder %s20, %s22
    %p26 = scmp.eq.s32.totalorder %s12, 0
    %p27 = por %p25, %p26
    %p28 = scmp.ne.s32.totalorder %s20, %s22
    %p29 = scmp.eq.s32.totalorder %s17, 1
    %p30 = por %p28, %p29
    %p31 = scmp.ne.s32.totalorder %s22, %s23
    %p32 = scmp.eq.s32.totalorder %s17, 0
    %p33 = por %p31, %p32
    %p34 = scmp.ne.s32.totalorder %s22, %s23
    %p35 = scmp.eq.s32.totalorder %s18, 1
    %p36 = por %p34, %p35
    %p38 = scmp.ne.s32.totalorder %s23, %s37
    %p39 = scmp.eq.s32.totalorder %s18, 0
    %p40 = por %p38, %p39
    %s42 = sadd.s32 %s41, 1
    %p45 = scmp.eq.s32.totalorder %s12, 1
    %p46 = scmp.ne.s32.totalorder %s41, %s43
    %p47 = scmp.eq.s32.totalorder %s12, 0
    %p48 = por %p46, %p47
    %p49 = scmp.ne.s32.totalorder %s41, %s43
    %p50 = scmp.eq.s32.totalorder %s17, 1
    %p51 = por %p49, %p50
    %p52 = scmp.ne.s32.totalorder %s43, %s44
    %p53 = scmp.eq.s32.totalorder %s17, 0
    %p54 = por %p52, %p53
    %p55 = scmp.ne.s32.totalorder %s43, %s44
    %p56 = scmp.eq.s32.totalorder %s18, 1
    %p57 = por %p55, %p56
    %p59 = scmp.ne.s32.totalorder %s44, %s58
    %p60 = scmp.eq.s32.totalorder %s18, 0
    %p61 = por %p59, %p60
    %s63 = sadd.s32 %s62, 1
    %p66 = scmp.eq.s32.totalorder %s12, 1
    %p67 = scmp.ne.s32.totalorder %s62, %s64
    %p68 = scmp.eq.s32.totalorder %s12, 0
    %p69 = por %p67, %p68
    %p70 = scmp.ne.s32.totalorder %s62, %s64
    %p71 = scmp.eq.s32.totalorder %s17, 1
    %p72 = por %p70, %p71
    %p73 = scmp.ne.s32.totalorder %s64, %s65
    %p74 = scmp.eq.s32.totalorder %s17, 0
    %p75 = por %p73, %p74
    %p76 = scmp.ne.s32.totalorder %s64, %s65
    %p77 = scmp.eq.s32.totalorder %s18, 1
    %p78 = por %p76, %p77
    %p80 = scmp.ne.s32.totalorder %s65, %s79
    %p81 = scmp.eq.s32.totalorder %s18, 0
    %p82 = por %p80, %p81
    %s84 = sadd.s32 %s83, 1
    %p87 = scmp.eq.s32.totalorder %s12, 1
    %p88 = scmp.ne.s32.totalorder %s83, %s85
    %p89 = scmp.eq.s32.totalorder %s12, 0
    %p90 = por %p88, %p89
    %p91 = scmp.ne.s32.totalorder %s83, %s85
    %p92 = scmp.eq.s32.totalorder %s17, 1
    %p93 = por %p91, %p92
    %p94 = scmp.ne.s32.totalorder %s85, %s86
    %p95 = scmp.eq.s32.totalorder %s17, 0
    %p96 = por %p94, %p95
    %p97 = scmp.ne.s32.totalorder %s85, %s86
    %p98 = scmp.eq.s32.totalorder %s18, 1
    %p99 = por %p97, %p98
    %p101 = scmp.ne.s32.totalorder %s86, %s100
    %p102 = scmp.eq.s32.totalorder %s18, 0
    %p103 = por %p101, %p102
    %s104 = ssub.s32 %s12, %s19
    %p105 = scmp.eq.s32.totalorder %s104, 0
    %s107 = sadd.s32 %s106, 1
    %s108 = scalar_select %p105, %s106, %s107
    %p111 = pneg %p105
    %p112 = scmp.eq.s32.totalorder %s12, 1
    %p113 = por %p111, %p112
    %p114 = scmp.ne.s32.totalorder %s106, %s109
    %p115 = scmp.eq.s32.totalorder %s12, 0
    %p116 = por %p114, %p115
    %p117 = scmp.ne.s32.totalorder %s106, %s109
    %p118 = scmp.eq.s32.totalorder %s17, 1
    %p119 = por %p117, %p118
    %p120 = scmp.ne.s32.totalorder %s109, %s110
    %p121 = scmp.eq.s32.totalorder %s17, 0
    %p122 = por %p120, %p121
    %p123 = scmp.ne.s32.totalorder %s109, %s110
    %p124 = scmp.eq.s32.totalorder %s18, 1
    %p125 = por %p123, %p124
    %p127 = scmp.ne.s32.totalorder %s110, %s126
    %p128 = scmp.eq.s32.totalorder %s18, 0
    %p129 = por %p127, %p128
    %s131 = sadd.s32 %s130, 1
    %p134 = scmp.eq.s32.totalorder %s12, 1
    %p135 = scmp.ne.s32.totalorder %s130, %s132
    %p136 = scmp.eq.s32.totalorder %s12, 0
    %p137 = por %p135, %p136
    %p138 = scmp.ne.s32.totalorder %s130, %s132
    %p139 = scmp.eq.s32.totalorder %s17, 1
    %p140 = por %p138, %p139
    %p141 = scmp.ne.s32.totalorder %s132, %s133
    %p142 = scmp.eq.s32.totalorder %s17, 0
    %p143 = por %p141, %p142
    %p144 = scmp.ne.s32.totalorder %s132, %s133
    %p145 = scmp.eq.s32.totalorder %s18, 1
    %p146 = por %p144, %p145
    %p148 = scmp.ne.s32.totalorder %s133, %s147
    %p149 = scmp.eq.s32.totalorder %s18, 0
    %p150 = por %p148, %p149
    %s151 = ssub.s32 %s12, %s19
    %p152 = scmp.eq.s32.totalorder %s151, 0
    %s154 = sadd.s32 %s153, 1
    %s155 = scalar_select %p152, %s153, %s154
    %p158 = pneg %p152
    %p159 = scmp.eq.s32.totalorder %s12, 1
    %p160 = por %p158, %p159
    %p161 = scmp.ne.s32.totalorder %s153, %s156
    %p162 = scmp.eq.s32.totalorder %s12, 0
    %p163 = por %p161, %p162
    %p164 = scmp.ne.s32.totalorder %s153, %s156
    %p165 = scmp.eq.s32.totalorder %s17, 1
    %p166 = por %p164, %p165
    %p167 = scmp.ne.s32.totalorder %s156, %s157
    %p168 = scmp.eq.s32.totalorder %s17, 0
    %p169 = por %p167, %p168
    %p170 = scmp.ne.s32.totalorder %s156, %s157
    %p171 = scmp.eq.s32.totalorder %s18, 1
    %p172 = por %p170, %p171
    %p174 = scmp.ne.s32.totalorder %s157, %s173
    %p175 = scmp.eq.s32.totalorder %s18, 0
    %p176 = por %p174, %p175
    %p177 = scmp.le.s32.totalorder 1, %s12
    %p178 = scmp.lt.s32.totalorder %s12, 3
    %p179 = pnand %p177, %p178
    %p180 = pneg %p179
    // Predicated region
    $region9: #{tpu_custom_call.1} parent=5 // pred_check
      _
    $region10: #{tpu_custom_call.1} parent=5 // pred_check_branch
      %182 = sbr.rel (%p179) target = $region12
    $region11: #{tpu_custom_call.1} parent=5 // pred_region
      %s183 = ssub.s32 %s12, 1
      // Predicated region
      $region13: #{tpu_custom_call.1} parent=11 // pred_check
        %p184 = pneg %p33
      $region14: #{tpu_custom_call.1} parent=11 // pred_check_branch
        %186 = sbr.rel (%p184) target = $region16
      $region15: #{tpu_custom_call.1} parent=11 // pred_region
        _
      $region16: #{tpu_custom_call.1} parent=11 // pred_fallthru
        _
      // Predicated region
      $region17: #{tpu_custom_call.1} parent=11 // pred_check
        %p187 = pneg %p54
      $region18: #{tpu_custom_call.1} parent=11 // pred_check_branch
        %189 = sbr.rel (%p187) target = $region20
      $region19: #{tpu_custom_call.1} parent=11 // pred_region
        _
      $region20: #{tpu_custom_call.1} parent=11 // pred_fallthru
        _
      // Predicated region
      $region21: #{tpu_custom_call.1} parent=11 // pred_check
        %p190 = pneg %p75
      $region22: #{tpu_custom_call.1} parent=11 // pred_check_branch
        %192 = sbr.rel (%p190) target = $region24
      $region23: #{tpu_custom_call.1} parent=11 // pred_region
        _
      $region24: #{tpu_custom_call.1} parent=11 // pred_fallthru
        _
      // Predicated region
      $region25: #{tpu_custom_call.1} parent=11 // pred_check
        %p193 = pneg %p96
      $region26: #{tpu_custom_call.1} parent=11 // pred_check_branch
        %195 = sbr.rel (%p193) target = $region28
      $region27: #{tpu_custom_call.1} parent=11 // pred_region
        _
      $region28: #{tpu_custom_call.1} parent=11 // pred_fallthru
        _
      // Predicated region
      $region29: #{tpu_custom_call.1} parent=11 // pred_check
        %p196 = pneg %p143
      $region30: #{tpu_custom_call.1} parent=11 // pred_check_branch
        %198 = sbr.rel (%p196) target = $region32
      $region31: #{tpu_custom_call.1} parent=11 // pred_region
        _
      $region32: #{tpu_custom_call.1} parent=11 // pred_fallthru
        _
    $region12: #{tpu_custom_call.1} parent=5 // pred_fallthru
      _
    %p199 = scmp.lt.s32.totalorder %s12, 2
    // Predicated region
    $region33: #{tpu_custom_call.1} parent=5 // pred_check
      %p200 = pneg %p199
    $region34: #{tpu_custom_call.1} parent=5 // pred_check_branch
      %202 = sbr.rel (%p200) target = $region36
    $region35: #{tpu_custom_call.1} parent=5 // pred_region
      // Predicated region
      $region37: #{tpu_custom_call.1} parent=35 // pred_check
        %p203 = pneg %p116
      $region38: #{tpu_custom_call.1} parent=35 // pred_check_branch
        %205 = sbr.rel (%p203) target = $region40
      $region39: #{tpu_custom_call.1} parent=35 // pred_region
        %s206 = smul.u32 8, %s12
        %p207 = scmp.lt.s32.totalorder %s206, 15
        %s208 = scalar_select %p207, %s206, 15
        %s209 = smul.addr %s208, 8
        %s210 = scalar_lea.vmem %s4, %s209
        %s211 = smul.u32 8, %s12
      $region40: #{tpu_custom_call.1} parent=35 // pred_fallthru
        _
    $region36: #{tpu_custom_call.1} parent=5 // pred_fallthru
      _
    %p212 = scmp.le.s32.totalorder 1, %s12
    %p213 = scmp.lt.s32.totalorder %s12, 3
    %p214 = pnand %p212, %p213
    %p215 = pneg %p214
    // Predicated region
    $region41: #{tpu_custom_call.1} parent=5 // pred_check
      _
    $region42: #{tpu_custom_call.1} parent=5 // pred_check_branch
      %217 = sbr.rel (%p214) target = $region44
    $region43: #{tpu_custom_call.1} parent=5 // pred_region
      %s218 = ssub.s32 %s12, 1
      %p219 = pneg %p33
      %p220 = pneg %p30
      %p221 = pneg %p54
      %p222 = pneg %p51
      %p223 = pneg %p75
      %p224 = pneg %p72
      %p225 = pneg %p96
      %p226 = pneg %p93
      %s227 = smul.u32 8, %s17
      %p228 = scmp.lt.s32.totalorder %s227, 15
      %s229 = scalar_select %p228, %s227, 15
      %s230 = smul.addr %s229, 8
      %s231 = scalar_lea.vmem %s4, %s230
      %p232 = pneg %p122
      %p233 = pneg %p119
      %p234 = pneg %p143
      %p235 = pneg %p140
      %p236 = pneg %p169
      %p237 = pneg %p166
      %s238 = smul.u32 8, %s17
      %p239 = scmp.lt.s32.totalorder %s238, 15
      %s240 = scalar_select %p239, %s238, 15
      %s241 = smul.addr %s240, 8
      %s242 = scalar_lea.vmem %s6, %s241
      %s243 = smul.u32 8, %s17
      %p244 = scmp.lt.s32.totalorder %s243, 15
      %s245 = scalar_select %p244, %s243, 15
      %s246 = smul.addr %s245, 8
      %s247 = scalar_lea.vmem %s4, %s246
      %s248 = smul.u32 8, %s17
      %s249 = smul.u32 8, %s17
      %p250 = scmp.lt.s32.totalorder %s249, 15
      %s251 = scalar_select %p250, %s249, 15
      %s252 = smul.addr %s251, 8
      %s253 = scalar_lea.vmem %s6, %s252
      %s254 = smul.u32 8, %s17
      %p255 = scmp.eq.s32.totalorder %s17, 0
      // Predicated region
      $region45: #{tpu_custom_call.1} parent=43 // pred_check
        %p256 = pneg %p255
      $region46: #{tpu_custom_call.1} parent=43 // pred_check_branch
        %258 = sbr.rel (%p256) target = $region48
      $region47: #{tpu_custom_call.1} parent=43 // pred_region
        %v259 = vld [vmem:[%s0] sm:$0xff]
        %v260 = vld [vmem:[%s0 + $0x8] sm:$0xff]
        %v261 = vld [vmem:[%s0 + $0x10] sm:$0xff]
        %v262 = vld [vmem:[%s0 + $0x18] sm:$0xff]
        %v263 = vld [vmem:[%s0 + $0x20] sm:$0xff]
        %v264 = vld [vmem:[%s0 + $0x28] sm:$0xff]
        %v265 = vld [vmem:[%s0 + $0x30] sm:$0xff]
        %v266 = vld [vmem:[%s0 + $0x38] sm:$0xff]
        %v267 = vld [vmem:[%s0 + $0x40] sm:$0xff]
        %v268 = vld [vmem:[%s0 + $0x48] sm:$0xff]
        %v269 = vld [vmem:[%s0 + $0x50] sm:$0xff]
        %v270 = vld [vmem:[%s0 + $0x58] sm:$0xff]
        %v271 = vld [vmem:[%s0 + $0x60] sm:$0xff]
        %v272 = vld [vmem:[%s0 + $0x68] sm:$0xff]
        %v273 = vld [vmem:[%s0 + $0x70] sm:$0xff]
        %v274 = vld [vmem:[%s0 + $0x78] sm:$0xff]
        %v275 = vld [vmem:[%s1] sm:$0xff]
        %v276 = vld [vmem:[%s1 + $0x8] sm:$0xff]
        %v277 = vld [vmem:[%s1 + $0x10] sm:$0xff]
        %v278 = vld [vmem:[%s1 + $0x18] sm:$0xff]
        %v279 = vld [vmem:[%s1 + $0x20] sm:$0xff]
        %v280 = vld [vmem:[%s1 + $0x28] sm:$0xff]
        %v281 = vld [vmem:[%s1 + $0x30] sm:$0xff]
        %v282 = vld [vmem:[%s1 + $0x38] sm:$0xff]
        %v283 = vld [vmem:[%s1 + $0x40] sm:$0xff]
        %v284 = vld [vmem:[%s1 + $0x48] sm:$0xff]
        %v285 = vld [vmem:[%s1 + $0x50] sm:$0xff]
        %v286 = vld [vmem:[%s1 + $0x58] sm:$0xff]
        %v287 = vld [vmem:[%s1 + $0x60] sm:$0xff]
        %v288 = vld [vmem:[%s1 + $0x68] sm:$0xff]
        %v289 = vld [vmem:[%s1 + $0x70] sm:$0xff]
        %v290 = vld [vmem:[%s1 + $0x78] sm:$0xff]
        %291 = vmatprep.subr.mxu0 0.0
        %292 = vmatpush1.msra.mxu0 %v275
        %293 = vmatprep.subr.mxu0 0.0
        %294 = vmatpush1.msra.mxu0 %v276
        %295 = vmatprep.subr.mxu0 0.0
        %296 = vmatpush1.msra.mxu0 %v277
        %297 = vmatprep.subr.mxu0 0.0
        %298 = vmatpush1.msra.mxu0 %v278
        %299 = vmatprep.subr.mxu0 0.0
        %300 = vmatpush1.msra.mxu0 %v279
        %301 = vmatprep.subr.mxu0 0.0
        %302 = vmatpush1.msra.mxu0 %v280
        %303 = vmatprep.subr.mxu0 0.0
        %304 = vmatpush1.msra.mxu0 %v281
        %305 = vmatprep.subr.mxu0 0.0
        %306 = vmatpush1.msra.mxu0 %v282
        %307 = vmatprep.subr.mxu0 0.0
        %308 = vmatpush1.msra.mxu0 %v283
        %309 = vmatprep.subr.mxu0 0.0
        %310 = vmatpush1.msra.mxu0 %v284
        %311 = vmatprep.subr.mxu0 0.0
        %312 = vmatpush1.msra.mxu0 %v285
        %313 = vmatprep.subr.mxu0 0.0
        %314 = vmatpush1.msra.mxu0 %v286
        %315 = vmatprep.subr.mxu0 0.0
        %316 = vmatpush1.msra.mxu0 %v287
        %317 = vmatprep.subr.mxu0 0.0
        %318 = vmatpush1.msra.mxu0 %v288
        %319 = vmatprep.subr.mxu0 0.0
        %320 = vmatpush1.msra.mxu0 %v289
        %321 = vmatprep.subr.mxu0 0.0
        %322 = vmatpush1.msra.mxu0 %v290
        %323 = vmatprep.subr.mxu0 0.0
        %324 = vmatpush1.msra.mxu0 0.0
        %325 = vmatprep.subr.mxu0 0.0
        %326 = vmatpush1.msra.mxu0 0.0
        %327 = vmatprep.subr.mxu0 0.0
        %328 = vmatpush1.msra.mxu0 0.0
        %329 = vmatprep.subr.mxu0 0.0
        %330 = vmatpush1.msra.mxu0 0.0
        %331 = vmatprep.subr.mxu0 0.0
        %332 = vmatpush1.msra.mxu0 0.0
        %333 = vmatprep.subr.mxu0 0.0
        %334 = vmatpush1.msra.mxu0 0.0
        %335 = vmatprep.subr.mxu0 0.0
        %336 = vmatpush1.msra.mxu0 0.0
        %337 = vmatprep.subr.mxu0 0.0
        %338 = vmatpush1.msra.mxu0 0.0
        %339 = vmatprep.subr.mxu0 0.0
        %340 = vmatpush1.msra.mxu0 0.0
        %341 = vmatprep.subr.mxu0 0.0
        %342 = vmatpush1.msra.mxu0 0.0
        %343 = vmatprep.subr.mxu0 0.0
        %344 = vmatpush1.msra.mxu0 0.0
        %345 = vmatprep.subr.mxu0 0.0
        %346 = vmatpush1.msra.mxu0 0.0
        %347 = vmatprep.subr.mxu0 0.0
        %348 = vmatpush1.msra.mxu0 0.0
        %349 = vmatprep.subr.mxu0 0.0
        %350 = vmatpush1.msra.mxu0 0.0
        %351 = vmatprep.subr.mxu0 0.0
        %352 = vmatpush1.msra.mxu0 0.0
        %353 = vmatprep.subr.mxu0 0.0
        %354 = vmatpush1.msra.mxu0 0.0
        %355 = vmatprep.mubr.f32.mxu0 0.0
        %356 = vmatmul.mubr.f32.gmra.mrb[0].mxu0 %v259
        %v357 = vpop.f32.mrb[0].mxu0
        %v358 = vadd.f32 0.0, %v357
        %v359 = vpop.f32.mrb[0].mxu0
        %360 = vmatprep.mubr.f32.mxu0 0.0
        %361 = vmatmul.mubr.f32.gmra.mrb[0].mxu0 %v260
        %v362 = vpop.f32.mrb[0].mxu0
        %v363 = vadd.f32 0.0, %v362
        %v364 = vpop.f32.mrb[0].mxu0
        %365 = vmatprep.mubr.f32.mxu0 0.0
        %366 = vmatmul.mubr.f32.gmra.mrb[0].mxu0 %v261
        %v367 = vpop.f32.mrb[0].mxu0
        %v368 = vadd.f32 0.0, %v367
        %v369 = vpop.f32.mrb[0].mxu0
        %370 = vmatprep.mubr.f32.mxu0 0.0
        %371 = vmatmul.mubr.f32.gmra.mrb[0].mxu0 %v262
        %v372 = vpop.f32.mrb[0].mxu0
        %v373 = vadd.f32 0.0, %v372
        %v374 = vpop.f32.mrb[0].mxu0
        %375 = vmatprep.mubr.f32.mxu0 0.0
        %376 = vmatmul.mubr.f32.gmra.mrb[0].mxu0 %v263
        %v377 = vpop.f32.mrb[0].mxu0
        %v378 = vadd.f32 0.0, %v377
        %v379 = vpop.f32.mrb[0].mxu0
        %380 = vmatprep.mubr.f32.mxu0 0.0
        %381 = vmatmul.mubr.f32.gmra.mrb[0].mxu0 %v264
        %v382 = vpop.f32.mrb[0].mxu0
        %v383 = vadd.f32 0.0, %v382
        %v384 = vpop.f32.mrb[0].mxu0
        %385 = vmatprep.mubr.f32.mxu0 0.0
        %386 = vmatmul.mubr.f32.gmra.mrb[0].mxu0 %v265
        %v387 = vpop.f32.mrb[0].mxu0
        %v388 = vadd.f32 0.0, %v387
        %v389 = vpop.f32.mrb[0].mxu0
        %390 = vmatprep.mubr.f32.mxu0 0.0
        %391 = vmatmul.mubr.f32.gmra.mrb[0].mxu0 %v266
        %v392 = vpop.f32.mrb[0].mxu0
        %v393 = vadd.f32 0.0, %v392
        %v394 = vpop.f32.mrb[0].mxu0
        %395 = vmatprep.mubr.f32.mxu0 0.0
        %396 = vmatmul.mubr.f32.gmra.mrb[0].mxu0 %v267
        %v397 = vpop.f32.mrb[0].mxu0
        %v398 = vadd.f32 0.0, %v397
        %v399 = vpop.f32.mrb[0].mxu0
        %400 = vmatprep.mubr.f32.mxu0 0.0
        %401 = vmatmul.mubr.f32.gmra.mrb[0].mxu0 %v268
        %v402 = vpop.f32.mrb[0].mxu0
        %v403 = vadd.f32 0.0, %v402
        %v404 = vpop.f32.mrb[0].mxu0
        %405 = vmatprep.mubr.f32.mxu0 0.0
        %406 = vmatmul.mubr.f32.gmra.mrb[0].mxu0 %v269
        %v407 = vpop.f32.mrb[0].mxu0
        %v408 = vadd.f32 0.0, %v407
        %v409 = vpop.f32.mrb[0].mxu0
        %410 = vmatprep.mubr.f32.mxu0 0.0
        %411 = vmatmul.mubr.f32.gmra.mrb[0].mxu0 %v270
        %v412 = vpop.f32.mrb[0].mxu0
        %v413 = vadd.f32 0.0, %v412
        %v414 = vpop.f32.mrb[0].mxu0
        %415 = vmatprep.mubr.f32.mxu0 0.0
        %416 = vmatmul.mubr.f32.gmra.mrb[0].mxu0 %v271
        %v417 = vpop.f32.mrb[0].mxu0
        %v418 = vadd.f32 0.0, %v417
        %v419 = vpop.f32.mrb[0].mxu0
        %420 = vmatprep.mubr.f32.mxu0 0.0
        %421 = vmatmul.mubr.f32.gmra.mrb[0].mxu0 %v272
        %v422 = vpop.f32.mrb[0].mxu0
        %v423 = vadd.f32 0.0, %v422
        %v424 = vpop.f32.mrb[0].mxu0
        %425 = vmatprep.mubr.f32.mxu0 0.0
        %426 = vmatmul.mubr.f32.gmra.mrb[0].mxu0 %v273
        %v427 = vpop.f32.mrb[0].mxu0
        %v428 = vadd.f32 0.0, %v427
        %v429 = vpop.f32.mrb[0].mxu0
        %430 = vmatprep.mubr.f32.mxu0 0.0
        %431 = vmatmul.mubr.f32.gmra.mrb[0].mxu0 %v274
        %v432 = vpop.f32.mrb[0].mxu0
        %v433 = vadd.f32 0.0, %v432
        %v434 = vpop.f32.mrb[0].mxu0
        %435 = vdwg.mxu0
        %v436 = vld [vmem:[%s2] sm:$0xff]
        %v437 = vld [vmem:[%s2 + $0x8] sm:$0xff]
        %v438 = vld [vmem:[%s2 + $0x10] sm:$0xff]
        %v439 = vld [vmem:[%s2 + $0x18] sm:$0xff]
        %vm440 = vcmask 261120
        %v442 = vsel %vm440, %v358, 0
        %v445 = vsel %vm440, %v363, 0
        %v448 = vsel %vm440, %v368, 0
        %v451 = vsel %vm440, %v373, 0
        %v454 = vsel %vm440, %v378, 0
        %v457 = vsel %vm440, %v383, 0
        %v460 = vsel %vm440, %v388, 0
        %v463 = vsel %vm440, %v393, 0
        %v466 = vsel %vm440, %v398, 0
        %v469 = vsel %vm440, %v403, 0
        %v472 = vsel %vm440, %v408, 0
        %v475 = vsel %vm440, %v413, 0
        %v478 = vsel %vm440, %v418, 0
        %v481 = vsel %vm440, %v423, 0
        %v484 = vsel %vm440, %v428, 0
        %v487 = vsel %vm440, %v433, 0
        %489 = vmatprep.subr.mxu0 0.0
        %490 = vmatpush1.msra.mxu0 %v436
        %491 = vmatprep.subr.mxu0 0.0
        %492 = vmatpush1.msra.mxu0 %v437
        %493 = vmatprep.subr.mxu0 0.0
        %494 = vmatpush1.msra.mxu0 %v438
        %495 = vmatprep.subr.mxu0 0.0
        %496 = vmatpush1.msra.mxu0 %v439
        %497 = vmatprep.subr.mxu0 0.0
        %498 = vmatpush1.msra.mxu0 0.0
        %499 = vmatprep.subr.mxu0 0.0
        %500 = vmatpush1.msra.mxu0 0.0
        %501 = vmatprep.subr.mxu0 0.0
        %502 = vmatpush1.msra.mxu0 0.0
        %503 = vmatprep.subr.mxu0 0.0
        %504 = vmatpush1.msra.mxu0 0.0
        %505 = vmatprep.subr.mxu0 0.0
        %506 = vmatpush1.msra.mxu0 0.0
        %507 = vmatprep.subr.mxu0 0.0
        %508 = vmatpush1.msra.mxu0 0.0
        %509 = vmatprep.subr.mxu0 0.0
        %510 = vmatpush1.msra.mxu0 0.0
        %511 = vmatprep.subr.mxu0 0.0
        %512 = vmatpush1.msra.mxu0 0.0
        %513 = vmatprep.subr.mxu0 0.0
        %514 = vmatpush1.msra.mxu0 0.0
        %515 = vmatprep.subr.mxu0 0.0
        %516 = vmatpush1.msra.mxu0 0.0
        %517 = vmatprep.subr.mxu0 0.0
        %518 = vmatpush1.msra.mxu0 0.0
        %519 = vmatprep.subr.mxu0 0.0
        %520 = vmatpush1.msra.mxu0 0.0
        %521 = vmatprep.subr.mxu0 0.0
        %522 = vmatpush1.msra.mxu0 0.0
        %523 = vmatprep.subr.mxu0 0.0
        %524 = vmatpush1.msra.mxu0 0.0
        %525 = vmatprep.subr.mxu0 0.0
        %526 = vmatpush1.msra.mxu0 0.0
        %527 = vmatprep.subr.mxu0 0.0
        %528 = vmatpush1.msra.mxu0 0.0
        %529 = vmatprep.subr.mxu0 0.0
        %530 = vmatpush1.msra.mxu0 0.0
        %531 = vmatprep.subr.mxu0 0.0
        %532 = vmatpush1.msra.mxu0 0.0
        %533 = vmatprep.subr.mxu0 0.0
        %534 = vmatpush1.msra.mxu0 0.0
        %535 = vmatprep.subr.mxu0 0.0
        %536 = vmatpush1.msra.mxu0 0.0
        %537 = vmatprep.subr.mxu0 0.0
        %538 = vmatpush1.msra.mxu0 0.0
        %539 = vmatprep.subr.mxu0 0.0
        %540 = vmatpush1.msra.mxu0 0.0
        %541 = vmatprep.subr.mxu0 0.0
        %542 = vmatpush1.msra.mxu0 0.0
        %543 = vmatprep.subr.mxu0 0.0
        %544 = vmatpush1.msra.mxu0 0.0
        %545 = vmatprep.subr.mxu0 0.0
        %546 = vmatpush1.msra.mxu0 0.0
        %547 = vmatprep.subr.mxu0 0.0
        %548 = vmatpush1.msra.mxu0 0.0
        %549 = vmatprep.subr.mxu0 0.0
        %550 = vmatpush1.msra.mxu0 0.0
        %551 = vmatprep.subr.mxu0 0.0
        %552 = vmatpush1.msra.mxu0 0.0
        %553 = vmatprep.mubr.f32.mxu0 0.0
        %554 = vmatmul.mubr.f32.gmra.mrb[0].mxu0 %v442
        %v555 = vpop.f32.mrb[0].mxu0
        %v556 = vadd.f32 0.0, %v555
        %v557 = vpop.f32.mrb[0].mxu0
        %558 = vmatprep.mubr.f32.mxu0 0.0
        %559 = vmatmul.mubr.f32.gmra.mrb[0].mxu0 %v445
        %v560 = vpop.f32.mrb[0].mxu0
        %v561 = vadd.f32 0.0, %v560
        %v562 = vpop.f32.mrb[0].mxu0
        %563 = vmatprep.mubr.f32.mxu0 0.0
        %564 = vmatmul.mubr.f32.gmra.mrb[0].mxu0 %v448
        %v565 = vpop.f32.mrb[0].mxu0
        %v566 = vadd.f32 0.0, %v565
        %v567 = vpop.f32.mrb[0].mxu0
        %568 = vmatprep.mubr.f32.mxu0 0.0
        %569 = vmatmul.mubr.f32.gmra.mrb[0].mxu0 %v451
        %v570 = vpop.f32.mrb[0].mxu0
        %v571 = vadd.f32 0.0, %v570
        %v572 = vpop.f32.mrb[0].mxu0
        %573 = vmatprep.mubr.f32.mxu0 0.0
        %574 = vmatmul.mubr.f32.gmra.mrb[0].mxu0 %v454
        %v575 = vpop.f32.mrb[0].mxu0
        %v576 = vadd.f32 0.0, %v575
        %v577 = vpop.f32.mrb[0].mxu0
        %578 = vmatprep.mubr.f32.mxu0 0.0
        %579 = vmatmul.mubr.f32.gmra.mrb[0].mxu0 %v457
        %v580 = vpop.f32.mrb[0].mxu0
        %v581 = vadd.f32 0.0, %v580
        %v582 = vpop.f32.mrb[0].mxu0
        %583 = vmatprep.mubr.f32.mxu0 0.0
        %584 = vmatmul.mubr.f32.gmra.mrb[0].mxu0 %v460
        %v585 = vpop.f32.mrb[0].mxu0
        %v586 = vadd.f32 0.0, %v585
        %v587 = vpop.f32.mrb[0].mxu0
        %588 = vmatprep.mubr.f32.mxu0 0.0
        %589 = vmatmul.mubr.f32.gmra.mrb[0].mxu0 %v463
        %v590 = vpop.f32.mrb[0].mxu0
        %v591 = vadd.f32 0.0, %v590
        %v592 = vpop.f32.mrb[0].mxu0
        %593 = vmatprep.mubr.f32.mxu0 0.0
        %594 = vmatmul.mubr.f32.gmra.mrb[0].mxu0 %v466
        %v595 = vpop.f32.mrb[0].mxu0
        %v596 = vadd.f32 0.0, %v595
        %v597 = vpop.f32.mrb[0].mxu0
        %598 = vmatprep.mubr.f32.mxu0 0.0
        %599 = vmatmul.mubr.f32.gmra.mrb[0].mxu0 %v469
        %v600 = vpop.f32.mrb[0].mxu0
        %v601 = vadd.f32 0.0, %v600
        %v602 = vpop.f32.mrb[0].mxu0
        %603 = vmatprep.mubr.f32.mxu0 0.0
        %604 = vmatmul.mubr.f32.gmra.mrb[0].mxu0 %v472
        %v605 = vpop.f32.mrb[0].mxu0
        %v606 = vadd.f32 0.0, %v605
        %v607 = vpop.f32.mrb[0].mxu0
        %608 = vmatprep.mubr.f32.mxu0 0.0
        %609 = vmatmul.mubr.f32.gmra.mrb[0].mxu0 %v475
        %v610 = vpop.f32.mrb[0].mxu0
        %v611 = vadd.f32 0.0, %v610
        %v612 = vpop.f32.mrb[0].mxu0
        %613 = vmatprep.mubr.f32.mxu0 0.0
        %614 = vmatmul.mubr.f32.gmra.mrb[0].mxu0 %v478
        %v615 = vpop.f32.mrb[0].mxu0
        %v616 = vadd.f32 0.0, %v615
        %v617 = vpop.f32.mrb[0].mxu0
        %618 = vmatprep.mubr.f32.mxu0 0.0
        %619 = vmatmul.mubr.f32.gmra.mrb[0].mxu0 %v481
        %v620 = vpop.f32.mrb[0].mxu0
        %v621 = vadd.f32 0.0, %v620
        %v622 = vpop.f32.mrb[0].mxu0
        %623 = vmatprep.mubr.f32.mxu0 0.0
        %624 = vmatmul.mubr.f32.gmra.mrb[0].mxu0 %v484
        %v625 = vpop.f32.mrb[0].mxu0
        %v626 = vadd.f32 0.0, %v625
        %v627 = vpop.f32.mrb[0].mxu0
        %628 = vmatprep.mubr.f32.mxu0 0.0
        %629 = vmatmul.mubr.f32.gmra.mrb[0].mxu0 %v487
        %v630 = vpop.f32.mrb[0].mxu0
        %v631 = vadd.f32 0.0, %v630
        %v632 = vpop.f32.mrb[0].mxu0
        %633 = vdwg.mxu0
        %v634 = vmax.f32 %v556, 0.0
        %v635 = vmax.f32 %v561, 0.0
        %v636 = vmax.f32 %v566, 0.0
        %v637 = vmax.f32 %v571, 0.0
        %v638 = vmax.f32 %v576, 0.0
        %v639 = vmax.f32 %v581, 0.0
        %v640 = vmax.f32 %v586, 0.0
        %v641 = vmax.f32 %v591, 0.0
        %v642 = vmax.f32 %v596, 0.0
        %v643 = vmax.f32 %v601, 0.0
        %v644 = vmax.f32 %v606, 0.0
        %v645 = vmax.f32 %v611, 0.0
        %v646 = vmax.f32 %v616, 0.0
        %v647 = vmax.f32 %v621, 0.0
        %v648 = vmax.f32 %v626, 0.0
        %v649 = vmax.f32 %v631, 0.0
        %v650 = vld [vmem:[%s3] sm:$0xff]
        %v651 = vld [vmem:[%s3 + $0x8] sm:$0xff]
        %v652 = vld [vmem:[%s3 + $0x10] sm:$0xff]
        %v653 = vld [vmem:[%s3 + $0x18] sm:$0xff]
        %v654 = vld [vmem:[%s3 + $0x20] sm:$0xff]
        %v655 = vld [vmem:[%s3 + $0x28] sm:$0xff]
        %v656 = vld [vmem:[%s3 + $0x30] sm:$0xff]
        %v657 = vld [vmem:[%s3 + $0x38] sm:$0xff]
        %v658 = vld [vmem:[%s3 + $0x40] sm:$0xff]
        %v659 = vld [vmem:[%s3 + $0x48] sm:$0xff]
        %v660 = vld [vmem:[%s3 + $0x50] sm:$0xff]
        %v661 = vld [vmem:[%s3 + $0x58] sm:$0xff]
        %v662 = vld [vmem:[%s3 + $0x60] sm:$0xff]
        %v663 = vld [vmem:[%s3 + $0x68] sm:$0xff]
        %v664 = vld [vmem:[%s3 + $0x70] sm:$0xff]
        %v665 = vld [vmem:[%s3 + $0x78] sm:$0xff]
        %v666 = vmul.f32 %v634, %v650
        %v667 = vmul.f32 %v635, %v651
        %v668 = vmul.f32 %v636, %v652
        %v669 = vmul.f32 %v637, %v653
        %v670 = vmul.f32 %v638, %v654
        %v671 = vmul.f32 %v639, %v655
        %v672 = vmul.f32 %v640, %v656
        %v673 = vmul.f32 %v641, %v657
        %v674 = vmul.f32 %v642, %v658
        %v675 = vmul.f32 %v643, %v659
        %v676 = vmul.f32 %v644, %v660
        %v677 = vmul.f32 %v645, %v661
        %v678 = vmul.f32 %v646, %v662
        %v679 = vmul.f32 %v647, %v663
        %v680 = vmul.f32 %v648, %v664
        %v681 = vmul.f32 %v649, %v665
        %vm682 = vcmask 130048
        %683 = vst.msk [vmem:[#allocation2] sm:$0xff] %vm682, %v666
        %684 = vst.msk [vmem:[#allocation2 + $0x8] sm:$0xff] %vm682, %v667
        %685 = vst.msk [vmem:[#allocation2 + $0x10] sm:$0xff] %vm682, %v668
        %686 = vst.msk [vmem:[#allocation2 + $0x18] sm:$0xff] %vm682, %v669
        %687 = vst.msk [vmem:[#allocation2 + $0x20] sm:$0xff] %vm682, %v670
        %688 = vst.msk [vmem:[#allocation2 + $0x28] sm:$0xff] %vm682, %v671
        %689 = vst.msk [vmem:[#allocation2 + $0x30] sm:$0xff] %vm682, %v672
        %690 = vst.msk [vmem:[#allocation2 + $0x38] sm:$0xff] %vm682, %v673
        %691 = vst.msk [vmem:[#allocation2 + $0x40] sm:$0xff] %vm682, %v674
        %692 = vst.msk [vmem:[#allocation2 + $0x48] sm:$0xff] %vm682, %v675
        %693 = vst.msk [vmem:[#allocation2 + $0x50] sm:$0xff] %vm682, %v676
        %694 = vst.msk [vmem:[#allocation2 + $0x58] sm:$0xff] %vm682, %v677
        %695 = vst.msk [vmem:[#allocation2 + $0x60] sm:$0xff] %vm682, %v678
        %696 = vst.msk [vmem:[#allocation2 + $0x68] sm:$0xff] %vm682, %v679
        %697 = vst.msk [vmem:[#allocation2 + $0x70] sm:$0xff] %vm682, %v680
        %698 = vst.msk [vmem:[#allocation2 + $0x78] sm:$0xff] %vm682, %v681
      $region48: #{tpu_custom_call.1} parent=43 // pred_fallthru
        _
      %v699 = vld [vmem:[%s247] sm:$0xff]
      %v700 = vld [vmem:[%s247 + $0x8] sm:$0xff]
      %v701 = vld [vmem:[%s247 + $0x10] sm:$0xff]
      %v702 = vld [vmem:[%s247 + $0x18] sm:$0xff]
      %v703 = vld [vmem:[%s247 + $0x20] sm:$0xff]
      %v704 = vld [vmem:[%s247 + $0x28] sm:$0xff]
      %v705 = vld [vmem:[%s247 + $0x30] sm:$0xff]
      %v706 = vld [vmem:[%s247 + $0x38] sm:$0xff]
      %v707 = vld [vmem:[#allocation2] sm:$0xff]
      %v708 = vld [vmem:[#allocation2 + $0x8] sm:$0xff]
      %v709 = vld [vmem:[#allocation2 + $0x10] sm:$0xff]
      %v710 = vld [vmem:[#allocation2 + $0x18] sm:$0xff]
      %v711 = vld [vmem:[#allocation2 + $0x20] sm:$0xff]
      %v712 = vld [vmem:[#allocation2 + $0x28] sm:$0xff]
      %v713 = vld [vmem:[#allocation2 + $0x30] sm:$0xff]
      %v714 = vld [vmem:[#allocation2 + $0x38] sm:$0xff]
      %v715 = vld [vmem:[#allocation2 + $0x40] sm:$0xff]
      %v716 = vld [vmem:[#allocation2 + $0x48] sm:$0xff]
      %v717 = vld [vmem:[#allocation2 + $0x50] sm:$0xff]
      %v718 = vld [vmem:[#allocation2 + $0x58] sm:$0xff]
      %v719 = vld [vmem:[#allocation2 + $0x60] sm:$0xff]
      %v720 = vld [vmem:[#allocation2 + $0x68] sm:$0xff]
      %v721 = vld [vmem:[#allocation2 + $0x70] sm:$0xff]
      %v722 = vld [vmem:[#allocation2 + $0x78] sm:$0xff]
      %723 = vmatprep.subr.mxu0 0.0
      %724 = vmatpush1.msra.mxu0 %v707
      %725 = vmatprep.subr.mxu0 0.0
      %726 = vmatpush1.msra.mxu0 %v708
      %727 = vmatprep.subr.mxu0 0.0
      %728 = vmatpush1.msra.mxu0 %v709
      %729 = vmatprep.subr.mxu0 0.0
      %730 = vmatpush1.msra.mxu0 %v710
      %731 = vmatprep.subr.mxu0 0.0
      %732 = vmatpush1.msra.mxu0 %v711
      %733 = vmatprep.subr.mxu0 0.0
      %734 = vmatpush1.msra.mxu0 %v712
      %735 = vmatprep.subr.mxu0 0.0
      %736 = vmatpush1.msra.mxu0 %v713
      %737 = vmatprep.subr.mxu0 0.0
      %738 = vmatpush1.msra.mxu0 %v714
      %739 = vmatprep.subr.mxu0 0.0
      %740 = vmatpush1.msra.mxu0 %v715
      %741 = vmatprep.subr.mxu0 0.0
      %742 = vmatpush1.msra.mxu0 %v716
      %743 = vmatprep.subr.mxu0 0.0
      %744 = vmatpush1.msra.mxu0 %v717
      %745 = vmatprep.subr.mxu0 0.0
      %746 = vmatpush1.msra.mxu0 %v718
      %747 = vmatprep.subr.mxu0 0.0
      %748 = vmatpush1.msra.mxu0 %v719
      %749 = vmatprep.subr.mxu0 0.0
      %750 = vmatpush1.msra.mxu0 %v720
      %751 = vmatprep.subr.mxu0 0.0
      %752 = vmatpush1.msra.mxu0 %v721
      %753 = vmatprep.subr.mxu0 0.0
      %754 = vmatpush1.msra.mxu0 %v722
      %755 = vmatprep.subr.mxu0 0.0
      %756 = vmatpush1.msra.mxu0 0.0
      %757 = vmatprep.subr.mxu0 0.0
      %758 = vmatpush1.msra.mxu0 0.0
      %759 = vmatprep.subr.mxu0 0.0
      %760 = vmatpush1.msra.mxu0 0.0
      %761 = vmatprep.subr.mxu0 0.0
      %762 = vmatpush1.msra.mxu0 0.0
      %763 = vmatprep.subr.mxu0 0.0
      %764 = vmatpush1.msra.mxu0 0.0
      %765 = vmatprep.subr.mxu0 0.0
      %766 = vmatpush1.msra.mxu0 0.0
      %767 = vmatprep.subr.mxu0 0.0
      %768 = vmatpush1.msra.mxu0 0.0
      %769 = vmatprep.subr.mxu0 0.0
      %770 = vmatpush1.msra.mxu0 0.0
      %771 = vmatprep.subr.mxu0 0.0
      %772 = vmatpush1.msra.mxu0 0.0
      %773 = vmatprep.subr.mxu0 0.0
      %774 = vmatpush1.msra.mxu0 0.0
      %775 = vmatprep.subr.mxu0 0.0
      %776 = vmatpush1.msra.mxu0 0.0
      %777 = vmatprep.subr.mxu0 0.0
      %778 = vmatpush1.msra.mxu0 0.0
      %779 = vmatprep.subr.mxu0 0.0
      %780 = vmatpush1.msra.mxu0 0.0
      %781 = vmatprep.subr.mxu0 0.0
      %782 = vmatpush1.msra.mxu0 0.0
      %783 = vmatprep.subr.mxu0 0.0
      %784 = vmatpush1.msra.mxu0 0.0
      %785 = vmatprep.subr.mxu0 0.0
      %786 = vmatpush1.msra.mxu0 0.0
      %787 = vmatprep.mubr.f32.mxu0 0.0
      %788 = vmatmul.mubr.f32.gmra.mrb[0].mxu0 %v699
      %v789 = vpop.f32.mrb[0].mxu0
      %v790 = vadd.f32 0.0, %v789
      %v791 = vpop.f32.mrb[0].mxu0
      %792 = vmatprep.mubr.f32.mxu0 0.0
      %793 = vmatmul.mubr.f32.gmra.mrb[0].mxu0 %v700
      %v794 = vpop.f32.mrb[0].mxu0
      %v795 = vadd.f32 0.0, %v794
      %v796 = vpop.f32.mrb[0].mxu0
      %797 = vmatprep.mubr.f32.mxu0 0.0
      %798 = vmatmul.mubr.f32.gmra.mrb[0].mxu0 %v701
      %v799 = vpop.f32.mrb[0].mxu0
      %v800 = vadd.f32 0.0, %v799
      %v801 = vpop.f32.mrb[0].mxu0
      %802 = vmatprep.mubr.f32.mxu0 0.0
      %803 = vmatmul.mubr.f32.gmra.mrb[0].mxu0 %v702
      %v804 = vpop.f32.mrb[0].mxu0
      %v805 = vadd.f32 0.0, %v804
      %v806 = vpop.f32.mrb[0].mxu0
      %807 = vmatprep.mubr.f32.mxu0 0.0
      %808 = vmatmul.mubr.f32.gmra.mrb[0].mxu0 %v703
      %v809 = vpop.f32.mrb[0].mxu0
      %v810 = vadd.f32 0.0, %v809
      %v811 = vpop.f32.mrb[0].mxu0
      %812 = vmatprep.mubr.f32.mxu0 0.0
      %813 = vmatmul.mubr.f32.gmra.mrb[0].mxu0 %v704
      %v814 = vpop.f32.mrb[0].mxu0
      %v815 = vadd.f32 0.0, %v814
      %v816 = vpop.f32.mrb[0].mxu0
      %817 = vmatprep.mubr.f32.mxu0 0.0
      %818 = vmatmul.mubr.f32.gmra.mrb[0].mxu0 %v705
      %v819 = vpop.f32.mrb[0].mxu0
      %v820 = vadd.f32 0.0, %v819
      %v821 = vpop.f32.mrb[0].mxu0
      %822 = vmatprep.mubr.f32.mxu0 0.0
      %823 = vmatmul.mubr.f32.gmra.mrb[0].mxu0 %v706
      %v824 = vpop.f32.mrb[0].mxu0
      %v825 = vadd.f32 0.0, %v824
      %v826 = vpop.f32.mrb[0].mxu0
      %827 = vdwg.mxu0
      %v828 = vld [vmem:[%s5] sm:$0xff]
      %v829 = vld [vmem:[%s5 + $0x8] sm:$0xff]
      %vm830 = vcmask 130048
      %v832 = vsel %vm830, %v790, 0
      %v835 = vsel %vm830, %v795, 0
      %v838 = vsel %vm830, %v800, 0
      %v841 = vsel %vm830, %v805, 0
      %v844 = vsel %vm830, %v810, 0
      %v847 = vsel %vm830, %v815, 0
      %v850 = vsel %vm830, %v820, 0
      %v853 = vsel %vm830, %v825, 0
      %855 = vmatprep.subr.mxu0 0.0
      %856 = vmatpush1.msra.mxu0 %v828
      %857 = vmatprep.subr.mxu0 0.0
      %858 = vmatpush1.msra.mxu0 %v829
      %859 = vmatprep.subr.mxu0 0.0
      %860 = vmatpush1.msra.mxu0 0.0
      %861 = vmatprep.subr.mxu0 0.0
      %862 = vmatpush1.msra.mxu0 0.0
      %863 = vmatprep.subr.mxu0 0.0
      %864 = vmatpush1.msra.mxu0 0.0
      %865 = vmatprep.subr.mxu0 0.0
      %866 = vmatpush1.msra.mxu0 0.0
      %867 = vmatprep.subr.mxu0 0.0
      %868 = vmatpush1.msra.mxu0 0.0
      %869 = vmatprep.subr.mxu0 0.0
      %870 = vmatpush1.msra.mxu0 0.0
      %871 = vmatprep.subr.mxu0 0.0
      %872 = vmatpush1.msra.mxu0 0.0
      %873 = vmatprep.subr.mxu0 0.0
      %874 = vmatpush1.msra.mxu0 0.0
      %875 = vmatprep.subr.mxu0 0.0
      %876 = vmatpush1.msra.mxu0 0.0
      %877 = vmatprep.subr.mxu0 0.0
      %878 = vmatpush1.msra.mxu0 0.0
      %879 = vmatprep.subr.mxu0 0.0
      %880 = vmatpush1.msra.mxu0 0.0
      %881 = vmatprep.subr.mxu0 0.0
      %882 = vmatpush1.msra.mxu0 0.0
      %883 = vmatprep.subr.mxu0 0.0
      %884 = vmatpush1.msra.mxu0 0.0
      %885 = vmatprep.subr.mxu0 0.0
      %886 = vmatpush1.msra.mxu0 0.0
      %887 = vmatprep.subr.mxu0 0.0
      %888 = vmatpush1.msra.mxu0 0.0
      %889 = vmatprep.subr.mxu0 0.0
      %890 = vmatpush1.msra.mxu0 0.0
      %891 = vmatprep.subr.mxu0 0.0
      %892 = vmatpush1.msra.mxu0 0.0
      %893 = vmatprep.subr.mxu0 0.0
      %894 = vmatpush1.msra.mxu0 0.0
      %895 = vmatprep.subr.mxu0 0.0
      %896 = vmatpush1.msra.mxu0 0.0
      %897 = vmatprep.subr.mxu0 0.0
      %898 = vmatpush1.msra.mxu0 0.0
      %899 = vmatprep.subr.mxu0 0.0
      %900 = vmatpush1.msra.mxu0 0.0
      %901 = vmatprep.subr.mxu0 0.0
      %902 = vmatpush1.msra.mxu0 0.0
      %903 = vmatprep.subr.mxu0 0.0
      %904 = vmatpush1.msra.mxu0 0.0
      %905 = vmatprep.subr.mxu0 0.0
      %906 = vmatpush1.msra.mxu0 0.0
      %907 = vmatprep.subr.mxu0 0.0
      %908 = vmatpush1.msra.mxu0 0.0
      %909 = vmatprep.subr.mxu0 0.0
      %910 = vmatpush1.msra.mxu0 0.0
      %911 = vmatprep.subr.mxu0 0.0
      %912 = vmatpush1.msra.mxu0 0.0
      %913 = vmatprep.subr.mxu0 0.0
      %914 = vmatpush1.msra.mxu0 0.0
      %915 = vmatprep.subr.mxu0 0.0
      %916 = vmatpush1.msra.mxu0 0.0
      %917 = vmatprep.subr.mxu0 0.0
      %918 = vmatpush1.msra.mxu0 0.0
      %919 = vmatprep.mubr.f32.mxu0 0.0
      %920 = vmatmul.mubr.f32.gmra.mrb[0].mxu0 %v832
      %v921 = vpop.f32.mrb[0].mxu0
      %v922 = vadd.f32 0.0, %v921
      %v923 = vpop.f32.mrb[0].mxu0
      %924 = vmatprep.mubr.f32.mxu0 0.0
      %925 = vmatmul.mubr.f32.gmra.mrb[0].mxu0 %v835
      %v926 = vpop.f32.mrb[0].mxu0
      %v927 = vadd.f32 0.0, %v926
      %v928 = vpop.f32.mrb[0].mxu0
      %929 = vmatprep.mubr.f32.mxu0 0.0
      %930 = vmatmul.mubr.f32.gmra.mrb[0].mxu0 %v838
      %v931 = vpop.f32.mrb[0].mxu0
      %v932 = vadd.f32 0.0, %v931
      %v933 = vpop.f32.mrb[0].mxu0
      %934 = vmatprep.mubr.f32.mxu0 0.0
      %935 = vmatmul.mubr.f32.gmra.mrb[0].mxu0 %v841
      %v936 = vpop.f32.mrb[0].mxu0
      %v937 = vadd.f32 0.0, %v936
      %v938 = vpop.f32.mrb[0].mxu0
      %939 = vmatprep.mubr.f32.mxu0 0.0
      %940 = vmatmul.mubr.f32.gmra.mrb[0].mxu0 %v844
      %v941 = vpop.f32.mrb[0].mxu0
      %v942 = vadd.f32 0.0, %v941
      %v943 = vpop.f32.mrb[0].mxu0
      %944 = vmatprep.mubr.f32.mxu0 0.0
      %945 = vmatmul.mubr.f32.gmra.mrb[0].mxu0 %v847
      %v946 = vpop.f32.mrb[0].mxu0
      %v947 = vadd.f32 0.0, %v946
      %v948 = vpop.f32.mrb[0].mxu0
      %949 = vmatprep.mubr.f32.mxu0 0.0
      %950 = vmatmul.mubr.f32.gmra.mrb[0].mxu0 %v850
      %v951 = vpop.f32.mrb[0].mxu0
      %v952 = vadd.f32 0.0, %v951
      %v953 = vpop.f32.mrb[0].mxu0
      %954 = vmatprep.mubr.f32.mxu0 0.0
      %955 = vmatmul.mubr.f32.gmra.mrb[0].mxu0 %v853
      %v956 = vpop.f32.mrb[0].mxu0
      %v957 = vadd.f32 0.0, %v956
      %v958 = vpop.f32.mrb[0].mxu0
      %959 = vdwg.mxu0
      %vm960 = vcmask 64512
      %961 = vst.msk [vmem:[%s253] sm:$0xff] %vm960, %v922
      %962 = vst.msk [vmem:[%s253 + $0x8] sm:$0xff] %vm960, %v927
      %963 = vst.msk [vmem:[%s253 + $0x10] sm:$0xff] %vm960, %v932
      %964 = vst.msk [vmem:[%s253 + $0x18] sm:$0xff] %vm960, %v937
      %965 = vst.msk [vmem:[%s253 + $0x20] sm:$0xff] %vm960, %v942
      %966 = vst.msk [vmem:[%s253 + $0x28] sm:$0xff] %vm960, %v947
      %967 = vst.msk [vmem:[%s253 + $0x30] sm:$0xff] %vm960, %v952
      %968 = vst.msk [vmem:[%s253 + $0x38] sm:$0xff] %vm960, %v957
      %s969 = smul.u32 8, %s17
      %p970 = scmp.lt.s32.totalorder %s969, 15
      %s971 = scalar_select %p970, %s969, 15
      %s972 = smul.addr %s971, 8
      %s973 = scalar_lea.vmem %s6, %s972
      // Predicated region
      $region49: #{tpu_custom_call.1} parent=43 // pred_check
        %p974 = pneg %p166
      $region50: #{tpu_custom_call.1} parent=43 // pred_check_branch
        %976 = sbr.rel (%p974) target = $region52
      $region51: #{tpu_custom_call.1} parent=43 // pred_region
        %s977 = smul.u32 8, %s17
      $region52: #{tpu_custom_call.1} parent=43 // pred_fallthru
        _
    $region44: #{tpu_custom_call.1} parent=5 // pred_fallthru
      _
    %p978 = scmp.le.s32.totalorder 2, %s12
    // Predicated region
    $region53: #{tpu_custom_call.1} parent=5 // pred_check
      %p979 = pneg %p978
    $region54: #{tpu_custom_call.1} parent=5 // pred_check_branch
      %981 = sbr.rel (%p979) target = $region56
    $region55: #{tpu_custom_call.1} parent=5 // pred_region
      %s982 = ssub.s32 %s12, 2
      // Predicated region
      $region57: #{tpu_custom_call.1} parent=55 // pred_check
        %p983 = pneg %p172
      $region58: #{tpu_custom_call.1} parent=55 // pred_check_branch
        %985 = sbr.rel (%p983) target = $region60
      $region59: #{tpu_custom_call.1} parent=55 // pred_region
        %s986 = smul.u32 8, %s18
        %p987 = scmp.lt.s32.totalorder %s986, 15
        %s988 = scalar_select %p987, %s986, 15
        %s989 = smul.addr %s988, 8
        %s990 = scalar_lea.vmem %s6, %s989
      $region60: #{tpu_custom_call.1} parent=55 // pred_fallthru
        _
    $region56: #{tpu_custom_call.1} parent=5 // pred_fallthru
      _
  $region6: #{tpu_custom_call.1} parent=0 // loop_footer
    %s16 = sadd.s32 1, %s12
  $region7: #{tpu_custom_call.1} parent=0 // loop_footer_branch
    %11 = sbr.rel target = $region3
  $region8: #{tpu_custom_call.1} parent=0 // loop_exit
    _

</llo_original>
